<compile_context>
chip_gen: v5e
topology: v5e:2x2
jax: 0.10.0
libtpu: 0.0.40
codegen_flags: <defaults>
</compile_context>

<pallas_src>
import numpy as np
import jax
import jax.numpy as jnp
from jax.experimental import pallas as pl
from jax.experimental.pallas import tpu as pltpu

# ---------------- small synthetic sizes (consistent with the module) ----------------
HIDDEN_DIM = 32      # CONTEXT_HIDDEN_DIM
POOLING_DIM = 64     # CONTEXT_POOLING_DIM == MLP_HEAD_DIM
NUM_OBJ_CLS = 16     # ROI_BOX_HEAD.NUM_CLASSES
NUM_REL_CLS = 32     # ROI_RELATION_HEAD.NUM_CLASSES
DEFAULT_TILE_R = 512  # large row tile: amortizes ~0.35us/grid-step overhead, fills the MXU M dim


def _round_up(x, m):
    return (x + m - 1) // m * m


# ------------------------- host-side weight packing (done once) -----------------------
def pack_rel_params(params, nr_pad=None):
    """Pack the 6 small Linear layers into 3 block-diag matrices with 128-lane-aligned groups."""
    (w_pc, b_pc, w_s1, b_s1, w_s2, b_s2,
     w_ctx, b_ctx, w_vis, b_vis, w_gate, b_gate) = params
    H2, P = w_pc.shape           # (2H, P)
    B32, H = w_s1.shape          # (32, H)
    NR = w_ctx.shape[1]
    if nr_pad is None:
        nr_pad = _round_up(NR, 128)          # lane-dense logits
    G1 = _round_up(P, 128)                   # post_cat / spt / post_ctx group width
    G2 = _round_up(H, 128)                   # spt-hidden group width
    K1 = H2 + B32 + P                        # [ctx_rep | pair_bbox | union]
    f32 = jnp.float32

    # W1: [ctx_rep | pair_bbox | union] -> [post_cat_pre | spt_hidden_pre | vis_dists]
    w1 = (jnp.zeros((K1, G1 + G2 + nr_pad), f32)
          .at[:H2, :P].set(w_pc)
          .at[H2:H2 + B32, G1:G1 + H].set(w_s1)
          .at[H2 + B32:, G1 + G2:G1 + G2 + NR].set(w_vis))
    b1 = (jnp.zeros((1, G1 + G2 + nr_pad), f32)
          .at[0, :P].set(b_pc)
          .at[0, G1:G1 + H].set(b_s1)
          .at[0, G1 + G2:G1 + G2 + NR].set(b_vis))

    # W2: spt_hidden (zero-padded K rows) -> spt_pre
    w2 = jnp.zeros((G2, G1), f32).at[:H, :P].set(w_s2)
    b2 = jnp.zeros((1, G1), f32).at[0, :P].set(b_s2)

    # W3: post_ctx (zero-padded K rows) -> [ctx_dists | gate_dists]
    w3 = (jnp.zeros((G1, 2 * nr_pad), f32)
          .at[:P, :NR].set(w_ctx).at[:P, nr_pad:nr_pad + NR].set(w_gate))
    b3 = (jnp.zeros((1, 2 * nr_pad), f32)
          .at[0, :NR].set(b_ctx).at[0, nr_pad:nr_pad + NR].set(b_gate))

    dims = dict(P=P, H=H, NR=NR, G1=G1, G2=G2, NRP=nr_pad, K1=K1)
    return (w1, b1, w2, b2, w3, b3), dims


# ------------------------------- fused Pallas kernel -----------------------------------
def rel_logits_pallas(x_slab, pair_cls_idx, freq_table_pad, packed, dims, *,
                      tile_r=DEFAULT_TILE_R, compute_dtype=jnp.bfloat16, out_dtype=None):
    """Fused causal relation-logit chain (post_cat, spt_emb, spatial gating, freq bias, 'gate' fusion).

    x_slab        : (R, 2H+32+P) contiguous [head|tail ctx rep | pair-box geometry | union feats]
    pair_cls_idx  : (R, 1) int32, head_cls * NUM_OBJ_CLS + tail_cls
    freq_table_pad: (NUM_OBJ_CLS^2, NRP) frequency-bias table, 128-lane padded
    packed, dims  : output of pack_rel_params
    Returns (R_pad, NRP) logits in out_dtype; padded LANES are exactly zero, padded tail ROWS
    are garbage and must be sliced off by the caller.
    """
    w1, b1, w2, b2, w3, b3 = packed
    G1, G2, NRP, K1 = dims["G1"], dims["G2"], dims["NRP"], dims["K1"]
    R = x_slab.shape[0]
    NPAIR = freq_table_pad.shape[0]
    if out_dtype is None:
        out_dtype = compute_dtype
    if R == 0:                                   # no relation pairs in this batch
        return jnp.zeros((0, NRP), out_dtype)

    # row tiling: big tiles, but guarantee >= 2 grid steps when possible so the "parallel"
    # grid axis can shard across v7x's two TensorCores.
    tile_r = max(8, min(tile_r, _round_up(R, 8)))
    R_pad = _round_up(R, tile_r)
    if R > 8 and R_pad // tile_r < 2:
        tile_r = max(8, _round_up((R + 1) // 2, 8))
        R_pad = _round_up(R, tile_r)

    def pad_rows(x):
        return x if x.shape[0] == R_pad else jnp.pad(x, ((0, R_pad - x.shape[0]), (0, 0)))

    cd = jnp.dtype(compute_dtype)                # bf16 halves HBM->VMEM DMA on every generation
    x_slab = pad_rows(x_slab).astype(cd)
    pair_cls_idx = pad_rows(pair_cls_idx.astype(jnp.int32))
    w1c, w2c, w3c = w1.astype(cd), w2.astype(cd), w3.astype(cd)
    wfc = freq_table_pad.astype(cd)

    def kernel(x_ref, idx_ref, w1r, b1r, w2r, b2r, w3r, b3r, wfr, out_ref):
        f32 = jnp.float32
        # matmul 1 (K=2H+32+P): post_cat + spt_emb[0] + vis_compress in one push
        m1 = jnp.dot(x_ref[...], w1r[...], preferred_element_type=f32) + b1r[...]
        ctx = jnp.maximum(m1[:, :G1], 0.0)               # post_cat(ctx_rep), lanes 0..G1-1
        s_h = jnp.maximum(m1[:, G1:G1 + G2], 0.0)        # spt_emb hidden,    lanes G1..G1+G2-1
        vis_d = m1[:, G1 + G2:]                          # vis_dists (no ReLU), padded lanes = 0
        # matmul 2: spt_emb second layer
        spt = jnp.maximum(
            jnp.dot(s_h.astype(cd), w2r[...], preferred_element_type=f32) + b2r[...], 0.0)
        post_ctx = (ctx * spt).astype(cd)                # spatial_for_vision gating (f32 mul)
        # matmul 3: ctx_compress + ctx_gate_fc in one push
        m3 = jnp.dot(post_ctx, w3r[...], preferred_element_type=f32) + b3r[...]
        ctx_d = m3[:, :NRP]
        gate_d = m3[:, NRP:]
        # in-kernel frequency-bias gather: one_hot(pair class) @ freq_table on the MXU
        # (replaces a 512 B/row HBM stream with a 4 B/row index; MXU has huge slack here)
        onehot = (jax.lax.broadcasted_iota(jnp.int32, (tile_r, NPAIR), 1)
                  == idx_ref[...]).astype(cd)
        frq = jnp.dot(onehot, wfr[...], preferred_element_type=f32)
        # fusion_type == 'gate'; 128-lane dense store, padded lanes exactly 0 (ctx_d padded = 0)
        out_ref[...] = (ctx_d * jax.nn.sigmoid(vis_d + frq + gate_d)).astype(out_ref.dtype)

    def row(d):
        return pl.BlockSpec((tile_r, d), lambda i: (i, 0))

    def rep(a):  # full array, same block every step -> stays resident in VMEM
        return pl.BlockSpec(a.shape, lambda i: (0, 0))

    out = pl.pallas_call(
        kernel,
        out_shape=jax.ShapeDtypeStruct((R_pad, NRP), out_dtype),
        grid=(R_pad // tile_r,),
        in_specs=[row(K1), row(1),
                  rep(w1c), rep(b1), rep(w2c), rep(b2), rep(w3c), rep(b3), rep(wfc)],
        out_specs=row(NRP),
        compiler_params=pltpu.CompilerParams(
            dimension_semantics=("parallel",),
            vmem_limit_bytes=32 * 1024 * 1024),   # explicit budget; safe on v7x's 64 MiB VMEM
    )(x_slab, pair_cls_idx, w1c, b1, w2c, b2, w3c, b3, wfc)
    return out


# ------------------------------- glue (plain JAX) -------------------------------------
def get_box_info(boxes, need_norm=True, scale=None):
    # boxes: (n, 4) xyxy  ->  (n, 8)  [x1,y1,x2,y2,cx,cy,w,h];  scale: scalar or (n,1)
    wh = boxes[:, 2:4] - boxes[:, 0:2] + 1.0
    center_box = jnp.concatenate([boxes[:, :2] + 0.5 * wh, wh], axis=1)
    box_info = jnp.concatenate([boxes, center_box], axis=1)
    if need_norm:
        box_info = box_info / scale
    return box_info


def get_box_pair_info(box1, box2):
    # box1/box2: (n, 8) normalized box info  ->  (n, 32)
    unionbox = jnp.stack([jnp.minimum(box1[:, 0], box2[:, 0]),
                          jnp.minimum(box1[:, 1], box2[:, 1]),
                          jnp.maximum(box1[:, 2], box2[:, 2]),
                          jnp.maximum(box1[:, 3], box2[:, 3])], axis=1)
    union_info = get_box_info(unionbox, need_norm=False)
    ibox = jnp.stack([jnp.maximum(box1[:, 0], box2[:, 0]),
                      jnp.maximum(box1[:, 1], box2[:, 1]),
                      jnp.minimum(box1[:, 2], box2[:, 2]),
                      jnp.minimum(box1[:, 3], box2[:, 3])], axis=1)
    empty = jnp.logical_or(ibox[:, 2] < ibox[:, 0], ibox[:, 3] < ibox[:, 1])[:, None]
    inter_info = jnp.where(empty, 0.0, get_box_info(ibox, need_norm=False))
    return jnp.concatenate([box1, box2, union_info, inter_info], axis=1)


def init_params(key):
    ks = jax.random.split(key, 8)

    def xavier(k, shape):
        std = (2.0 / (shape[0] + shape[1])) ** 0.5
        return std * jax.random.normal(k, shape, jnp.float32)

    post_emb_w = (10.0 * (1.0 / HIDDEN_DIM) ** 0.5) * jax.random.normal(
        ks[0], (HIDDEN_DIM, 2 * HIDDEN_DIM), jnp.float32)
    post_emb_b = jnp.zeros((2 * HIDDEN_DIM,), jnp.float32)

    w_pc = xavier(ks[1], (2 * HIDDEN_DIM, POOLING_DIM)); b_pc = jnp.zeros((POOLING_DIM,), jnp.float32)
    w_s1 = xavier(ks[2], (32, HIDDEN_DIM));              b_s1 = jnp.zeros((HIDDEN_DIM,), jnp.float32)
    w_s2 = xavier(ks[3], (HIDDEN_DIM, POOLING_DIM));     b_s2 = jnp.zeros((POOLING_DIM,), jnp.float32)
    w_ctx = xavier(ks[4], (POOLING_DIM, NUM_REL_CLS));   b_ctx = jnp.zeros((NUM_REL_CLS,), jnp.float32)
    w_vis = xavier(ks[5], (POOLING_DIM, NUM_REL_CLS));   b_vis = jnp.zeros((NUM_REL_CLS,), jnp.float32)
    w_gate = xavier(ks[6], (POOLING_DIM, NUM_REL_CLS));  b_gate = jnp.zeros((NUM_REL_CLS,), jnp.float32)

    return (post_emb_w, post_emb_b,
            (w_pc, b_pc, w_s1, b_s1, w_s2, b_s2,
             w_ctx, b_ctx, w_vis, b_vis, w_gate, b_gate))


def causal_predictor_forward(boxes_list, img_sizes, rel_pair_idxs, edge_ctx,
                             obj_dists, obj_preds, union_features, freq_table_pad,
                             post_emb_w, post_emb_b, packed_rel, dims,
                             num_objs, num_rels, *,
                             compute_dtype=jnp.bfloat16, tile_r=DEFAULT_TILE_R):
    # TODO(synk): the Motifs LSTMContext / VCTree / VTransE context layer is a large recurrent
    # submodule; its outputs (obj_dists, obj_preds, edge_ctx) are taken as precomputed inputs.

    # post_emb: tiny (N,H)x(H,2H) GEMM — left to XLA; a grid=(1,) pallas_call is pure launch overhead.
    edge_rep = (edge_ctx @ post_emb_w + post_emb_b).reshape(-1, 2, HIDDEN_DIM)
    head_rep, tail_rep = edge_rep[:, 0, :], edge_rep[:, 1, :]

    # one batched gather with globally-offset pair indices (no per-image gather/concat chain)
    offsets = np.cumsum([0] + list(num_objs[:-1]))
    glob_pairs = jnp.concatenate(
        [idx + int(offsets[i]) for i, idx in enumerate(rel_pair_idxs)], axis=0)     # (R, 2)
    h_idx, t_idx = glob_pairs[:, 0], glob_pairs[:, 1]

    ctx_rep = jnp.concatenate([head_rep[h_idx], tail_rep[t_idx]], axis=-1)           # (R, 2H)

    # batched box geometry with per-object normalization scale
    boxes_all = jnp.concatenate(boxes_list, axis=0)
    scales = jnp.concatenate([
        jnp.full((n,), float(max(max(s[0], s[1]), 100)), jnp.float32)
        for n, s in zip(num_objs, img_sizes)])
    binfo = get_box_info(boxes_all, need_norm=True, scale=scales[:, None])           # (N, 8)
    pair_bbox = get_box_pair_info(binfo[h_idx], binfo[t_idx])                        # (R, 32)

    # FrequencyBias.index_with_labels index — the table lookup itself happens INSIDE the kernel
    pair_cls_idx = (obj_preds[h_idx] * NUM_OBJ_CLS + obj_preds[t_idx]).astype(jnp.int32)[:, None]

    # single contiguous (R, 2H+32+P) slab: [ctx_rep | pair_bbox | union]
    x_slab = jnp.concatenate([ctx_rep, pair_bbox, union_features], axis=1)

    rel_pad = rel_logits_pallas(x_slab, pair_cls_idx, freq_table_pad, packed_rel, dims,
                                tile_r=tile_r, compute_dtype=compute_dtype)
    R = x_slab.shape[0]
    rel_dists = rel_pad[:R, :NUM_REL_CLS]      # single XLA slice drops padded rows and lanes

    obj_dist_list = list(jnp.split(obj_dists, np.cumsum(num_objs)[:-1], axis=0))
    rel_dist_list = list(jnp.split(rel_dists, np.cumsum(num_rels)[:-1], axis=0))
    # TODO(synk): training branch (aux CE losses, binary loss, moving-average buffers) and
    # effect_analysis counterfactual branches (TDE/NIE/TE) are not implemented (inference, effect_type='none').
    return obj_dist_list, rel_dist_list, {}


def reference_rel_logits(ctx_rep, pair_bbox, union_feats, frq_dists, params):
    (w_pc, b_pc, w_s1, b_s1, w_s2, b_s2,
     w_ctx, b_ctx, w_vis, b_vis, w_gate, b_gate) = params
    ctx = jax.nn.relu(ctx_rep @ w_pc + b_pc)
    spt = jax.nn.relu(jax.nn.relu(pair_bbox @ w_s1 + b_s1) @ w_s2 + b_s2)
    post_ctx = ctx * spt
    vis_d = union_feats @ w_vis + b_vis
    ctx_d = post_ctx @ w_ctx + b_ctx
    gate_d = post_ctx @ w_gate + b_gate
    return ctx_d * jax.nn.sigmoid(vis_d + frq_dists + gate_d)


# ----------------------------------- driver -------------------------------------------
if __name__ == "__main__":
    key = jax.random.PRNGKey(0)
    k_param, k_ctx, k_dist, k_box, k_pair, k_union, k_freq = jax.random.split(key, 7)

    num_objs = [4, 4]
    num_rels = [8, 8]
    n_obj, n_rel = sum(num_objs), sum(num_rels)
    img_sizes = [(100.0, 100.0), (100.0, 100.0)]

    post_emb_w, post_emb_b, rel_params = init_params(k_param)
    packed_rel, dims = pack_rel_params(rel_params)

    edge_ctx = 0.1 * jax.random.normal(k_ctx, (n_obj, HIDDEN_DIM), jnp.float32)
    obj_dists = jax.random.normal(k_dist, (n_obj, NUM_OBJ_CLS), jnp.float32)
    obj_preds = jnp.argmax(obj_dists[:, 1:], axis=-1) + 1   # skip background class

    boxes_list = []
    kb = jax.random.split(k_box, len(num_objs))
    for i, n in enumerate(num_objs):
        xy1 = jax.random.uniform(kb[i], (n, 2), jnp.float32, 0.0, 60.0)
        wh = jax.random.uniform(jax.random.fold_in(kb[i], 1), (n, 2), jnp.float32, 5.0, 40.0)
        boxes_list.append(jnp.concatenate([xy1, xy1 + wh], axis=1))

    kp = jax.random.split(k_pair, len(num_rels))
    rel_pair_idxs = [jax.random.randint(kp[i], (num_rels[i], 2), 0, num_objs[i])
                     for i in range(len(num_rels))]

    union_features = 0.1 * jax.random.normal(k_union, (n_rel, POOLING_DIM), jnp.float32)
    freq_table = 0.1 * jax.random.normal(k_freq, (NUM_OBJ_CLS * NUM_OBJ_CLS, NUM_REL_CLS),
                                         jnp.float32)
    freq_table_pad = jnp.pad(freq_table, ((0, 0), (0, dims["NRP"] - NUM_REL_CLS)))

    # pure-JAX reference recomputed with the original (unfused, per-image) structure
    edge_rep_ref = (edge_ctx @ post_emb_w + post_emb_b).reshape(n_obj, 2, HIDDEN_DIM)
    head_r, tail_r = edge_rep_ref[:, 0, :], edge_rep_ref[:, 1, :]
    offs = np.cumsum([0] + num_objs[:-1])
    ctx_chunks, bbox_chunks, frq_chunks = [], [], []
    for i, pidx in enumerate(rel_pair_idxs):
        o = int(offs[i])
        ctx_chunks.append(jnp.concatenate([head_r[o + pidx[:, 0]], tail_r[o + pidx[:, 1]]], -1))
        sc = float(max(max(img_sizes[i][0], img_sizes[i][1]), 100))
        binfo = get_box_info(boxes_list[i], True, sc)
        bbox_chunks.append(get_box_pair_info(binfo[pidx[:, 0]], binfo[pidx[:, 1]]))
        pp = jnp.stack([obj_preds[o + pidx[:, 0]], obj_preds[o + pidx[:, 1]]], 1)
        frq_chunks.append(freq_table[pp[:, 0] * NUM_OBJ_CLS + pp[:, 1]])
    ref = reference_rel_logits(jnp.concatenate(ctx_chunks, 0),
                               jnp.concatenate(bbox_chunks, 0),
                               union_features,
                               jnp.concatenate(frq_chunks, 0), rel_params)

    # ---- f32 run (tight correctness check) ----
    obj_dist_list, rel_dist_list, add_losses = causal_predictor_forward(
        boxes_list, img_sizes, rel_pair_idxs, edge_ctx, obj_dists, obj_preds,
        union_features, freq_table_pad, post_emb_w, post_emb_b, packed_rel, dims,
        num_objs, num_rels, compute_dtype=jnp.float32)
    rel_dists = jnp.concatenate(rel_dist_list, axis=0)
    jax.block_until_ready(rel_dists)
    assert rel_dists.shape == (n_rel, NUM_REL_CLS)
    assert bool(jnp.allclose(rel_dists.astype(jnp.float32), ref, atol=2e-2, rtol=2e-2)), \
        "mismatch vs reference (f32)"

    # ---- bf16 default path (deployment path on v5e/v6e/v7x: bf16 in/out, f32 accumulate) ----
    _, rel_dist_list_bf16, _ = causal_predictor_forward(
        boxes_list, img_sizes, rel_pair_idxs, edge_ctx, obj_dists, obj_preds,
        union_features, freq_table_pad, post_emb_w, post_emb_b, packed_rel, dims,
        num_objs, num_rels)  # compute_dtype defaults to bf16
    rel_bf16 = jnp.concatenate(rel_dist_list_bf16, axis=0).astype(jnp.float32)
    jax.block_until_ready(rel_bf16)
    assert bool(jnp.all(jnp.isfinite(rel_bf16)))
    assert bool(jnp.allclose(rel_bf16, ref, atol=3e-1, rtol=2e-1)), "mismatch vs reference (bf16)"

    print("KERNEL_OK")
</pallas_src>

<mosaic_0001>
module attributes {stable_mosaic.version = 11 : i64} {
  func.func @kernel(%arg0: i32, %arg1: memref<8x160xf32, #tpu.memory_space<vmem>>, %arg2: memref<8x1xi32, #tpu.memory_space<vmem>>, %arg3: memref<160x384xf32, #tpu.memory_space<vmem>>, %arg4: memref<1x384xf32, #tpu.memory_space<vmem>>, %arg5: memref<128x128xf32, #tpu.memory_space<vmem>>, %arg6: memref<1x128xf32, #tpu.memory_space<vmem>>, %arg7: memref<128x256xf32, #tpu.memory_space<vmem>>, %arg8: memref<1x256xf32, #tpu.memory_space<vmem>>, %arg9: memref<256x128xf32, #tpu.memory_space<vmem>>, %arg10: memref<8x128xf32, #tpu.memory_space<vmem>>) attributes {dimension_semantics = [#tpu.dimension_semantics<parallel>], iteration_bounds = array<i64: 2>, scalar_prefetch = 0 : i64, scratch_operands = 0 : i64, tpu.core_type = #tpu.core_type<tc>, window_params = [{transform_indices = @transform_0, window_bounds = array<i64: 8, 160>}, {transform_indices = @transform_1, window_bounds = array<i64: 8, 1>}, {pipeline_mode = #tpu.pipeline_mode<synchronous>, transform_indices = @transform_2, window_bounds = array<i64: 160, 384>}, {pipeline_mode = #tpu.pipeline_mode<synchronous>, transform_indices = @transform_3, window_bounds = array<i64: 1, 384>}, {pipeline_mode = #tpu.pipeline_mode<synchronous>, transform_indices = @transform_4, window_bounds = array<i64: 128, 128>}, {pipeline_mode = #tpu.pipeline_mode<synchronous>, transform_indices = @transform_5, window_bounds = array<i64: 1, 128>}, {pipeline_mode = #tpu.pipeline_mode<synchronous>, transform_indices = @transform_6, window_bounds = array<i64: 128, 256>}, {pipeline_mode = #tpu.pipeline_mode<synchronous>, transform_indices = @transform_7, window_bounds = array<i64: 1, 256>}, {pipeline_mode = #tpu.pipeline_mode<synchronous>, transform_indices = @transform_8, window_bounds = array<i64: 256, 128>}, {transform_indices = @transform_9, window_bounds = array<i64: 8, 128>}]} {
    %c0 = arith.constant 0 : index
    %c0_0 = arith.constant 0 : index
    %0 = vector.load %arg1[%c0, %c0_0] : memref<8x160xf32, #tpu.memory_space<vmem>>, vector<8x160xf32>
    %c0_1 = arith.constant 0 : index
    %c0_2 = arith.constant 0 : index
    %1 = vector.load %arg3[%c0_1, %c0_2] : memref<160x384xf32, #tpu.memory_space<vmem>>, vector<160x384xf32>
    %cst = arith.constant dense<0.000000e+00> : vector<8x384xf32>
    %2 = tpu.matmul %0, %1, %cst {dimension_numbers = #tpu.dot_dimension_numbers<[1], [0], [0], [1], [0, 0, 1, 1], [], []>} : vector<8x160xf32>, vector<160x384xf32>, vector<8x384xf32> -> vector<8x384xf32>
    %c0_3 = arith.constant 0 : index
    %c0_4 = arith.constant 0 : index
    %3 = vector.load %arg4[%c0_3, %c0_4] : memref<1x384xf32, #tpu.memory_space<vmem>>, vector<1x384xf32>
    %4 = vector.broadcast %3 : vector<1x384xf32> to vector<8x384xf32>
    %5 = arith.addf %2, %4 : vector<8x384xf32>
    %6 = vector.extract_strided_slice %5 {offsets = [0, 0], sizes = [8, 128], strides = [1, 1]} : vector<8x384xf32> to vector<8x128xf32>
    %cst_5 = arith.constant 0.000000e+00 : f32
    %7 = vector.broadcast %cst_5 : f32 to vector<8x128xf32>
    %8 = arith.maximumf %6, %7 : vector<8x128xf32>
    %9 = vector.extract_strided_slice %5 {offsets = [0, 128], sizes = [8, 128], strides = [1, 1]} : vector<8x384xf32> to vector<8x128xf32>
    %cst_6 = arith.constant 0.000000e+00 : f32
    %10 = vector.broadcast %cst_6 : f32 to vector<8x128xf32>
    %11 = arith.maximumf %9, %10 : vector<8x128xf32>
    %12 = vector.extract_strided_slice %5 {offsets = [0, 256], sizes = [8, 128], strides = [1, 1]} : vector<8x384xf32> to vector<8x128xf32>
    %c0_7 = arith.constant 0 : index
    %c0_8 = arith.constant 0 : index
    %13 = vector.load %arg5[%c0_7, %c0_8] : memref<128x128xf32, #tpu.memory_space<vmem>>, vector<128x128xf32>
    %cst_9 = arith.constant dense<0.000000e+00> : vector<8x128xf32>
    %14 = tpu.matmul %11, %13, %cst_9 {dimension_numbers = #tpu.dot_dimension_numbers<[1], [0], [0], [1], [0, 0, 1, 1], [], []>} : vector<8x128xf32>, vector<128x128xf32>, vector<8x128xf32> -> vector<8x128xf32>
    %c0_10 = arith.constant 0 : index
    %c0_11 = arith.constant 0 : index
    %15 = vector.load %arg6[%c0_10, %c0_11] : memref<1x128xf32, #tpu.memory_space<vmem>>, vector<1x128xf32>
    %16 = vector.broadcast %15 : vector<1x128xf32> to vector<8x128xf32>
    %17 = arith.addf %14, %16 : vector<8x128xf32>
    %cst_12 = arith.constant 0.000000e+00 : f32
    %18 = vector.broadcast %cst_12 : f32 to vector<8x128xf32>
    %19 = arith.maximumf %17, %18 : vector<8x128xf32>
    %20 = arith.mulf %8, %19 : vector<8x128xf32>
    %c0_13 = arith.constant 0 : index
    %c0_14 = arith.constant 0 : index
    %21 = vector.load %arg7[%c0_13, %c0_14] : memref<128x256xf32, #tpu.memory_space<vmem>>, vector<128x256xf32>
    %cst_15 = arith.constant dense<0.000000e+00> : vector<8x256xf32>
    %22 = tpu.matmul %20, %21, %cst_15 {dimension_numbers = #tpu.dot_dimension_numbers<[1], [0], [0], [1], [0, 0, 1, 1], [], []>} : vector<8x128xf32>, vector<128x256xf32>, vector<8x256xf32> -> vector<8x256xf32>
    %c0_16 = arith.constant 0 : index
    %c0_17 = arith.constant 0 : index
    %23 = vector.load %arg8[%c0_16, %c0_17] : memref<1x256xf32, #tpu.memory_space<vmem>>, vector<1x256xf32>
    %24 = vector.broadcast %23 : vector<1x256xf32> to vector<8x256xf32>
    %25 = arith.addf %22, %24 : vector<8x256xf32>
    %26 = vector.extract_strided_slice %25 {offsets = [0, 0], sizes = [8, 128], strides = [1, 1]} : vector<8x256xf32> to vector<8x128xf32>
    %27 = vector.extract_strided_slice %25 {offsets = [0, 128], sizes = [8, 128], strides = [1, 1]} : vector<8x256xf32> to vector<8x128xf32>
    %28 = tpu.iota {dimensions = array<i32: 1>} : vector<8x256xi32>
    %c0_18 = arith.constant 0 : index
    %c0_19 = arith.constant 0 : index
    %29 = vector.load %arg2[%c0_18, %c0_19] : memref<8x1xi32, #tpu.memory_space<vmem>>, vector<8x1xi32>
    %30 = vector.broadcast %29 : vector<8x1xi32> to vector<8x256xi32>
    %31 = arith.cmpi eq, %28, %30 : vector<8x256xi32>
    %32 = arith.extui %31 : vector<8x256xi1> to vector<8x256xi32>
    %33 = arith.sitofp %32 : vector<8x256xi32> to vector<8x256xf32>
    %c0_20 = arith.constant 0 : index
    %c0_21 = arith.constant 0 : index
    %34 = vector.load %arg9[%c0_20, %c0_21] : memref<256x128xf32, #tpu.memory_space<vmem>>, vector<256x128xf32>
    %cst_22 = arith.constant dense<0.000000e+00> : vector<8x128xf32>
    %35 = tpu.matmul %33, %34, %cst_22 {dimension_numbers = #tpu.dot_dimension_numbers<[1], [0], [0], [1], [0, 0, 1, 1], [], []>} : vector<8x256xf32>, vector<256x128xf32>, vector<8x128xf32> -> vector<8x128xf32>
    %36 = arith.addf %12, %35 : vector<8x128xf32>
    %37 = arith.addf %36, %27 : vector<8x128xf32>
    %38 = arith.negf %37 : vector<8x128xf32>
    %39 = math.exp %38 : vector<8x128xf32>
    %cst_23 = arith.constant 1.000000e+00 : f32
    %40 = vector.broadcast %cst_23 : f32 to vector<8x128xf32>
    %41 = arith.addf %40, %39 : vector<8x128xf32>
    %42 = arith.divf %40, %41 : vector<8x128xf32>
    %43 = arith.mulf %26, %42 : vector<8x128xf32>
    %c0_24 = arith.constant 0 : index
    %c0_25 = arith.constant 0 : index
    %44 = vector.load %arg10[%c0_24, %c0_25] : memref<8x128xf32, #tpu.memory_space<vmem>>, vector<8x128xf32>
    tpu.vector_store %arg10[%c0_24, %c0_25], %43 {strides = array<i32>} : memref<8x128xf32, #tpu.memory_space<vmem>>, vector<8x128xf32>,
    return
  }
  func.func @transform_0(%arg0: i32) -> (i32, i32) {
    %c0_i32 = arith.constant 0 : i32
    %c0_i32_0 = arith.constant 0 : i32
    return %arg0, %c0_i32 : i32, i32
  }
  func.func @transform_1(%arg0: i32) -> (i32, i32) {
    %c0_i32 = arith.constant 0 : i32
    %c0_i32_0 = arith.constant 0 : i32
    return %arg0, %c0_i32 : i32, i32
  }
  func.func @transform_2(%arg0: i32) -> (i32, i32) {
    %c0_i32 = arith.constant 0 : i32
    %c0_i32_0 = arith.constant 0 : i32
    %c0_i32_1 = arith.constant 0 : i32
    return %c0_i32, %c0_i32_0 : i32, i32
  }
  func.func @transform_3(%arg0: i32) -> (i32, i32) {
    %c0_i32 = arith.constant 0 : i32
    %c0_i32_0 = arith.constant 0 : i32
    %c0_i32_1 = arith.constant 0 : i32
    return %c0_i32, %c0_i32_0 : i32, i32
  }
  func.func @transform_4(%arg0: i32) -> (i32, i32) {
    %c0_i32 = arith.constant 0 : i32
    %c0_i32_0 = arith.constant 0 : i32
    %c0_i32_1 = arith.constant 0 : i32
    return %c0_i32, %c0_i32_0 : i32, i32
  }
  func.func @transform_5(%arg0: i32) -> (i32, i32) {
    %c0_i32 = arith.constant 0 : i32
    %c0_i32_0 = arith.constant 0 : i32
    %c0_i32_1 = arith.constant 0 : i32
    return %c0_i32, %c0_i32_0 : i32, i32
  }
  func.func @transform_6(%arg0: i32) -> (i32, i32) {
    %c0_i32 = arith.constant 0 : i32
    %c0_i32_0 = arith.constant 0 : i32
    %c0_i32_1 = arith.constant 0 : i32
    return %c0_i32, %c0_i32_0 : i32, i32
  }
  func.func @transform_7(%arg0: i32) -> (i32, i32) {
    %c0_i32 = arith.constant 0 : i32
    %c0_i32_0 = arith.constant 0 : i32
    %c0_i32_1 = arith.constant 0 : i32
    return %c0_i32, %c0_i32_0 : i32, i32
  }
  func.func @transform_8(%arg0: i32) -> (i32, i32) {
    %c0_i32 = arith.constant 0 : i32
    %c0_i32_0 = arith.constant 0 : i32
    %c0_i32_1 = arith.constant 0 : i32
    return %c0_i32, %c0_i32_0 : i32, i32
  }
  func.func @transform_9(%arg0: i32) -> (i32, i32) {
    %c0_i32 = arith.constant 0 : i32
    %c0_i32_0 = arith.constant 0 : i32
    return %arg0, %c0_i32 : i32, i32
  }
}

</mosaic_0001>

<llo_original>
// kernel: tpu_custom_call.1
$region0: #{tpu_custom_call.1}
  #allocation0 [shape = 'u32[]', space=smem, size = 0x4, offset = 0x4, fixed_abs, tag = 'smem constant byte address 0x4 - core index']
  #allocation1 [shape = 'u32[72,128]{1,0:T(1,128)}', space=vmem, size = 0x9000, scoped, tag = 'internal scratch']
  %s0 = inlined_call_operand.hbm [shape: f32[16,160], index: 0, kind: input, shape index: {}]
  %s1 = inlined_call_operand.vmem [shape: s32[16,1], index: 1, kind: input, shape index: {}]
  %s2 = inlined_call_operand.hbm [shape: f32[160,384], index: 2, kind: input, shape index: {}]
  %s3 = inlined_call_operand.vmem [shape: f32[1,384], index: 3, kind: input, shape index: {}]
  %s4 = inlined_call_operand.hbm [shape: f32[128,128], index: 4, kind: input, shape index: {}]
  %s5 = inlined_call_operand.vmem [shape: f32[1,128], index: 5, kind: input, shape index: {}]
  %s6 = inlined_call_operand.hbm [shape: f32[128,256], index: 6, kind: input, shape index: {}]
  %s7 = inlined_call_operand.vmem [shape: f32[1,256], index: 7, kind: input, shape index: {}]
  %s8 = inlined_call_operand.hbm [shape: f32[256,128], index: 8, kind: input, shape index: {}]
  %s9 = inlined_call_operand.hbm [shape: f32[16,128], index: 9, kind: output, shape index: {}]
  %s10 = sld [smem:[#allocation0]]
  $region89: #{tpu_custom_call.1} parent=0
    _
  %s12 = ssub.s32 1, %s10
  %s13 = scalar_select 0, %s12, %s10
  $region1: #{tpu_custom_call.1} parent=0
    #allocation2 [shape = 'u8[16384]{0}', space=vmem, size = 0x4000, scoped, tag = 'input window, operand 0']
    #allocation3 [shape = 's32[2]{0}', space=sflag, size = 0x8, scoped, tag = 'scoped memory for tpu_custom_call.1']
    #allocation4 [shape = 's32[2]{0}', space=sflag, size = 0x8, scoped, tag = 'scoped memory for tpu_custom_call.1']
    #allocation5 [shape = 'u8[245760]{0}', space=vmem, size = 0x3c000, scoped, tag = 'input window, operand 2, single buffered']
    #allocation6 [shape = 's32[1]{0}', space=sflag, size = 0x4, scoped, tag = 'scoped memory for tpu_custom_call.1']
    #allocation7 [shape = 'u8[65536]{0}', space=vmem, size = 0x10000, scoped, tag = 'input window, operand 4, single buffered']
    #allocation8 [shape = 'u8[131072]{0}', space=vmem, size = 0x20000, scoped, tag = 'input window, operand 6, single buffered']
    #allocation9 [shape = 's32[1]{0}', space=sflag, size = 0x4, scoped, tag = 'scoped memory for tpu_custom_call.1']
    #allocation10 [shape = 'u8[131072]{0}', space=vmem, size = 0x20000, scoped, tag = 'input window, operand 8, single buffered']
    #allocation11 [shape = 'u8[8192]{0}', space=vmem, size = 0x2000, scoped, tag = 'output window, operand 0']
    %14 = vsyncpa [#allocation3], 0
    %s15 = scalar_lea.sflag [#allocation3], 1
    %16 = vsyncpa %s15, 0
    %17 = vsyncpa [#allocation6], 0
    %18 = vsyncpa [#allocation9], 0
    %19 = vsyncpa [#allocation4], 0
    %s20 = scalar_lea.sflag [#allocation4], 1
    %21 = vsyncpa %s20, 0
    loop: start=0, step=1, limit=4
    $region2: #{tpu_custom_call.1} parent=1 // loop_pre_header
      _
    $region3: #{tpu_custom_call.1} parent=1 // loop_header
      %s23 = sphi 0, %s27
      %p24 = scmp.ge.s32.totalorder %s23, 4
      %s33 = sphi 0, %s35
      %s36 = sphi 0, %s33
      %s37 = sphi 0, %s36
      %s53 = sphi 0, %s37
      %s59 = sphi 0, %s61
      %s62 = sphi 0, %s59
      %s63 = sphi 0, %s62
      %s79 = sphi 0, %s63
      %s83 = sphi 0, %s83
      %s85 = sphi 0, %s83
      %s86 = sphi 0, %s85
      %s100 = sphi 0, %s86
      %s104 = sphi 0, %s104
      %s106 = sphi 0, %s104
      %s107 = sphi 0, %s106
      %s121 = sphi 0, %s107
      %s125 = sphi 0, %s125
      %s127 = sphi 0, %s125
      %s128 = sphi 0, %s127
      %s142 = sphi 0, %s128
      %s146 = sphi 0, %s146
      %s148 = sphi 0, %s146
      %s149 = sphi 0, %s148
      %s163 = sphi 0, %s149
      %s167 = sphi 0, %s167
      %s169 = sphi 0, %s167
      %s170 = sphi 0, %s169
      %s184 = sphi 0, %s170
      %s188 = sphi 0, %s188
      %s190 = sphi 0, %s188
      %s191 = sphi 0, %s190
      %s205 = sphi 0, %s191
      %s209 = sphi 0, %s209
      %s211 = sphi 0, %s209
      %s212 = sphi 0, %s211
      %s226 = sphi 0, %s212
      %s232 = sphi 0, %s234
      %s235 = sphi 0, %s232
      %s236 = sphi 0, %s235
      %s252 = sphi 0, %s236
    $region4: #{tpu_custom_call.1} parent=1 // loop_header_branch
      %26 = sbr.rel (%p24) target = $region8
    $region5: #{tpu_custom_call.1} parent=1 // loop_body
      %s28 = ssub.s32 %s23, 1
      %s29 = ssub.s32 %s23, 2
      %s30 = sadd.s32 %s23, 1
      %s31 = ssub.s32 %s23, %s30
      %p32 = scmp.eq.s32.totalorder %s31, 0
      %s34 = sadd.s32 %s33, 1
      %s35 = scalar_select %p32, %s33, %s34
      %p38 = pneg %p32
      %p39 = scmp.eq.s32.totalorder %s23, 1
      %p40 = por %p38, %p39
      %p41 = scmp.ne.s32.totalorder %s33, %s36
      %p42 = scmp.eq.s32.totalorder %s23, 0
      %p43 = por %p41, %p42
      %p44 = scmp.ne.s32.totalorder %s33, %s36
      %p45 = scmp.eq.s32.totalorder %s28, 1
      %p46 = por %p44, %p45
      %p47 = scmp.ne.s32.totalorder %s36, %s37
      %p48 = scmp.eq.s32.totalorder %s28, 0
      %p49 = por %p47, %p48
      %p50 = scmp.ne.s32.totalorder %s36, %s37
      %p51 = scmp.eq.s32.totalorder %s29, 1
      %p52 = por %p50, %p51
      %p54 = scmp.ne.s32.totalorder %s37, %s53
      %p55 = scmp.eq.s32.totalorder %s29, 0
      %p56 = por %p54, %p55
      %s57 = ssub.s32 %s23, %s30
      %p58 = scmp.eq.s32.totalorder %s57, 0
      %s60 = sadd.s32 %s59, 1
      %s61 = scalar_select %p58, %s59, %s60
      %p64 = pneg %p58
      %p65 = scmp.eq.s32.totalorder %s23, 1
      %p66 = por %p64, %p65
      %p67 = scmp.ne.s32.totalorder %s59, %s62
      %p68 = scmp.eq.s32.totalorder %s23, 0
      %p69 = por %p67, %p68
      %p70 = scmp.ne.s32.totalorder %s59, %s62
      %p71 = scmp.eq.s32.totalorder %s28, 1
      %p72 = por %p70, %p71
      %p73 = scmp.ne.s32.totalorder %s62, %s63
      %p74 = scmp.eq.s32.totalorder %s28, 0
      %p75 = por %p73, %p74
      %p76 = scmp.ne.s32.totalorder %s62, %s63
      %p77 = scmp.eq.s32.totalorder %s29, 1
      %p78 = por %p76, %p77
      %p80 = scmp.ne.s32.totalorder %s63, %s79
      %p81 = scmp.eq.s32.totalorder %s29, 0
      %p82 = por %p80, %p81
      %s84 = sadd.s32 %s83, 1
      %p87 = scmp.eq.s32.totalorder %s23, 1
      %p88 = scmp.ne.s32.totalorder %s83, %s85
      %p89 = scmp.eq.s32.totalorder %s23, 0
      %p90 = por %p88, %p89
      %p91 = scmp.ne.s32.totalorder %s83, %s85
      %p92 = scmp.eq.s32.totalorder %s28, 1
      %p93 = por %p91, %p92
      %p94 = scmp.ne.s32.totalorder %s85, %s86
      %p95 = scmp.eq.s32.totalorder %s28, 0
      %p96 = por %p94, %p95
      %p97 = scmp.ne.s32.totalorder %s85, %s86
      %p98 = scmp.eq.s32.totalorder %s29, 1
      %p99 = por %p97, %p98
      %p101 = scmp.ne.s32.totalorder %s86, %s100
      %p102 = scmp.eq.s32.totalorder %s29, 0
      %p103 = por %p101, %p102
      %s105 = sadd.s32 %s104, 1
      %p108 = scmp.eq.s32.totalorder %s23, 1
      %p109 = scmp.ne.s32.totalorder %s104, %s106
      %p110 = scmp.eq.s32.totalorder %s23, 0
      %p111 = por %p109, %p110
      %p112 = scmp.ne.s32.totalorder %s104, %s106
      %p113 = scmp.eq.s32.totalorder %s28, 1
      %p114 = por %p112, %p113
      %p115 = scmp.ne.s32.totalorder %s106, %s107
      %p116 = scmp.eq.s32.totalorder %s28, 0
      %p117 = por %p115, %p116
      %p118 = scmp.ne.s32.totalorder %s106, %s107
      %p119 = scmp.eq.s32.totalorder %s29, 1
      %p120 = por %p118, %p119
      %p122 = scmp.ne.s32.totalorder %s107, %s121
      %p123 = scmp.eq.s32.totalorder %s29, 0
      %p124 = por %p122, %p123
      %s126 = sadd.s32 %s125, 1
      %p129 = scmp.eq.s32.totalorder %s23, 1
      %p130 = scmp.ne.s32.totalorder %s125, %s127
      %p131 = scmp.eq.s32.totalorder %s23, 0
      %p132 = por %p130, %p131
      %p133 = scmp.ne.s32.totalorder %s125, %s127
      %p134 = scmp.eq.s32.totalorder %s28, 1
      %p135 = por %p133, %p134
      %p136 = scmp.ne.s32.totalorder %s127, %s128
      %p137 = scmp.eq.s32.totalorder %s28, 0
      %p138 = por %p136, %p137
      %p139 = scmp.ne.s32.totalorder %s127, %s128
      %p140 = scmp.eq.s32.totalorder %s29, 1
      %p141 = por %p139, %p140
      %p143 = scmp.ne.s32.totalorder %s128, %s142
      %p144 = scmp.eq.s32.totalorder %s29, 0
      %p145 = por %p143, %p144
      %s147 = sadd.s32 %s146, 1
      %p150 = scmp.eq.s32.totalorder %s23, 1
      %p151 = scmp.ne.s32.totalorder %s146, %s148
      %p152 = scmp.eq.s32.totalorder %s23, 0
      %p153 = por %p151, %p152
      %p154 = scmp.ne.s32.totalorder %s146, %s148
      %p155 = scmp.eq.s32.totalorder %s28, 1
      %p156 = por %p154, %p155
      %p157 = scmp.ne.s32.totalorder %s148, %s149
      %p158 = scmp.eq.s32.totalorder %s28, 0
      %p159 = por %p157, %p158
      %p160 = scmp.ne.s32.totalorder %s148, %s149
      %p161 = scmp.eq.s32.totalorder %s29, 1
      %p162 = por %p160, %p161
      %p164 = scmp.ne.s32.totalorder %s149, %s163
      %p165 = scmp.eq.s32.totalorder %s29, 0
      %p166 = por %p164, %p165
      %s168 = sadd.s32 %s167, 1
      %p171 = scmp.eq.s32.totalorder %s23, 1
      %p172 = scmp.ne.s32.totalorder %s167, %s169
      %p173 = scmp.eq.s32.totalorder %s23, 0
      %p174 = por %p172, %p173
      %p175 = scmp.ne.s32.totalorder %s167, %s169
      %p176 = scmp.eq.s32.totalorder %s28, 1
      %p177 = por %p175, %p176
      %p178 = scmp.ne.s32.totalorder %s169, %s170
      %p179 = scmp.eq.s32.totalorder %s28, 0
      %p180 = por %p178, %p179
      %p181 = scmp.ne.s32.totalorder %s169, %s170
      %p182 = scmp.eq.s32.totalorder %s29, 1
      %p183 = por %p181, %p182
      %p185 = scmp.ne.s32.totalorder %s170, %s184
      %p186 = scmp.eq.s32.totalorder %s29, 0
      %p187 = por %p185, %p186
      %s189 = sadd.s32 %s188, 1
      %p192 = scmp.eq.s32.totalorder %s23, 1
      %p193 = scmp.ne.s32.totalorder %s188, %s190
      %p194 = scmp.eq.s32.totalorder %s23, 0
      %p195 = por %p193, %p194
      %p196 = scmp.ne.s32.totalorder %s188, %s190
      %p197 = scmp.eq.s32.totalorder %s28, 1
      %p198 = por %p196, %p197
      %p199 = scmp.ne.s32.totalorder %s190, %s191
      %p200 = scmp.eq.s32.totalorder %s28, 0
      %p201 = por %p199, %p200
      %p202 = scmp.ne.s32.totalorder %s190, %s191
      %p203 = scmp.eq.s32.totalorder %s29, 1
      %p204 = por %p202, %p203
      %p206 = scmp.ne.s32.totalorder %s191, %s205
      %p207 = scmp.eq.s32.totalorder %s29, 0
      %p208 = por %p206, %p207
      %s210 = sadd.s32 %s209, 1
      %p213 = scmp.eq.s32.totalorder %s23, 1
      %p214 = scmp.ne.s32.totalorder %s209, %s211
      %p215 = scmp.eq.s32.totalorder %s23, 0
      %p216 = por %p214, %p215
      %p217 = scmp.ne.s32.totalorder %s209, %s211
      %p218 = scmp.eq.s32.totalorder %s28, 1
      %p219 = por %p217, %p218
      %p220 = scmp.ne.s32.totalorder %s211, %s212
      %p221 = scmp.eq.s32.totalorder %s28, 0
      %p222 = por %p220, %p221
      %p223 = scmp.ne.s32.totalorder %s211, %s212
      %p224 = scmp.eq.s32.totalorder %s29, 1
      %p225 = por %p223, %p224
      %p227 = scmp.ne.s32.totalorder %s212, %s226
      %p228 = scmp.eq.s32.totalorder %s29, 0
      %p229 = por %p227, %p228
      %s230 = ssub.s32 %s23, %s30
      %p231 = scmp.eq.s32.totalorder %s230, 0
      %s233 = sadd.s32 %s232, 1
      %s234 = scalar_select %p231, %s232, %s233
      %p237 = pneg %p231
      %p238 = scmp.eq.s32.totalorder %s23, 1
      %p239 = por %p237, %p238
      %p240 = scmp.ne.s32.totalorder %s232, %s235
      %p241 = scmp.eq.s32.totalorder %s23, 0
      %p242 = por %p240, %p241
      %p243 = scmp.ne.s32.totalorder %s232, %s235
      %p244 = scmp.eq.s32.totalorder %s28, 1
      %p245 = por %p243, %p244
      %p246 = scmp.ne.s32.totalorder %s235, %s236
      %p247 = scmp.eq.s32.totalorder %s28, 0
      %p248 = por %p246, %p247
      %p249 = scmp.ne.s32.totalorder %s235, %s236
      %p250 = scmp.eq.s32.totalorder %s29, 1
      %p251 = por %p249, %p250
      %p253 = scmp.ne.s32.totalorder %s236, %s252
      %p254 = scmp.eq.s32.totalorder %s29, 0
      %p255 = por %p253, %p254
      %p256 = scmp.le.s32.totalorder 1, %s23
      %p257 = scmp.lt.s32.totalorder %s23, 3
      %p258 = pnand %p256, %p257
      %p259 = pneg %p258
      // Predicated region
      $region9: #{tpu_custom_call.1} parent=5 // pred_check
        _
      $region10: #{tpu_custom_call.1} parent=5 // pred_check_branch
        %261 = sbr.rel (%p258) target = $region12
      $region11: #{tpu_custom_call.1} parent=5 // pred_region
        %s262 = ssub.s32 %s23, 1
        // Predicated region
        $region13: #{tpu_custom_call.1} parent=11 // pred_check
          %p263 = pneg %p96
        $region14: #{tpu_custom_call.1} parent=11 // pred_check_branch
          %265 = sbr.rel (%p263) target = $region16
        $region15: #{tpu_custom_call.1} parent=11 // pred_region
          %267 = vsyncadd [#allocation6], 0
          %s268 = sshll.u32 %s2, 4
          %s269 = int_to_ptr.hbm [resolvable:$true] %s268
          %s270 = sshll.u32 [#allocation5], 4
          %s271 = int_to_ptr.vmem [resolvable:$true] %s270
          %276 = dma.hbm_to_vmem [thread:$0]  %s269, 7680, %s271, [#allocation6], 384, 384, 24
        $region16: #{tpu_custom_call.1} parent=11 // pred_fallthru
          _
        // Predicated region
        $region17: #{tpu_custom_call.1} parent=11 // pred_check
          %p277 = pneg %p117
        $region18: #{tpu_custom_call.1} parent=11 // pred_check_branch
          %279 = sbr.rel (%p277) target = $region20
        $region19: #{tpu_custom_call.1} parent=11 // pred_region
          _
        $region20: #{tpu_custom_call.1} parent=11 // pred_fallthru
          _
        // Predicated region
        $region21: #{tpu_custom_call.1} parent=11 // pred_check
          %p280 = pneg %p138
        $region22: #{tpu_custom_call.1} parent=11 // pred_check_branch
          %282 = sbr.rel (%p280) target = $region24
        $region23: #{tpu_custom_call.1} parent=11 // pred_region
          %284 = vsyncadd [#allocation6], 0
          %s285 = sshll.u32 %s4, 4
          %s286 = int_to_ptr.hbm [resolvable:$true] %s285
          %s287 = sshll.u32 [#allocation7], 4
          %s288 = int_to_ptr.vmem [resolvable:$true] %s287
          %293 = dma.hbm_to_vmem [thread:$0]  %s286, 2048, %s288, [#allocation6], 128, 128, 8
        $region24: #{tpu_custom_call.1} parent=11 // pred_fallthru
          _
        // Predicated region
        $region25: #{tpu_custom_call.1} parent=11 // pred_check
          %p294 = pneg %p159
        $region26: #{tpu_custom_call.1} parent=11 // pred_check_branch
          %296 = sbr.rel (%p294) target = $region28
        $region27: #{tpu_custom_call.1} parent=11 // pred_region
          _
        $region28: #{tpu_custom_call.1} parent=11 // pred_fallthru
          _
        // Predicated region
        $region29: #{tpu_custom_call.1} parent=11 // pred_check
          %p297 = pneg %p180
        $region30: #{tpu_custom_call.1} parent=11 // pred_check_branch
          %299 = sbr.rel (%p297) target = $region32
        $region31: #{tpu_custom_call.1} parent=11 // pred_region
          %301 = vsyncadd [#allocation9], 0
          %s302 = sshll.u32 %s6, 4
          %s303 = int_to_ptr.hbm [resolvable:$true] %s302
          %s304 = sshll.u32 [#allocation8], 4
          %s305 = int_to_ptr.vmem [resolvable:$true] %s304
          %310 = dma.hbm_to_vmem [thread:$0]  %s303, 4096, %s305, [#allocation9], 256, 256, 16
        $region32: #{tpu_custom_call.1} parent=11 // pred_fallthru
          _
        // Predicated region
        $region33: #{tpu_custom_call.1} parent=11 // pred_check
          %p311 = pneg %p201
        $region34: #{tpu_custom_call.1} parent=11 // pred_check_branch
          %313 = sbr.rel (%p311) target = $region36
        $region35: #{tpu_custom_call.1} parent=11 // pred_region
          _
        $region36: #{tpu_custom_call.1} parent=11 // pred_fallthru
          _
        // Predicated region
        $region37: #{tpu_custom_call.1} parent=11 // pred_check
          %p314 = pneg %p222
        $region38: #{tpu_custom_call.1} parent=11 // pred_check_branch
          %316 = sbr.rel (%p314) target = $region40
        $region39: #{tpu_custom_call.1} parent=11 // pred_region
          %318 = vsyncadd [#allocation9], 0
          %s319 = sshll.u32 %s8, 4
          %s320 = int_to_ptr.hbm [resolvable:$true] %s319
          %s321 = sshll.u32 [#allocation10], 4
          %s322 = int_to_ptr.vmem [resolvable:$true] %s321
          %327 = dma.hbm_to_vmem [thread:$0]  %s320, 4096, %s322, [#allocation9], 128, 128, 8
        $region40: #{tpu_custom_call.1} parent=11 // pred_fallthru
          _
      $region12: #{tpu_custom_call.1} parent=5 // pred_fallthru
        _
      %p328 = scmp.lt.s32.totalorder %s23, 2
      // Predicated region
      $region41: #{tpu_custom_call.1} parent=5 // pred_check
        %p329 = pneg %p328
      $region42: #{tpu_custom_call.1} parent=5 // pred_check_branch
        %331 = sbr.rel (%p329) target = $region44
      $region43: #{tpu_custom_call.1} parent=5 // pred_region
        // Predicated region
        $region45: #{tpu_custom_call.1} parent=43 // pred_check
          %p332 = pneg %p43
        $region46: #{tpu_custom_call.1} parent=43 // pred_check_branch
          %334 = sbr.rel (%p332) target = $region48
        $region47: #{tpu_custom_call.1} parent=43 // pred_region
          %s335 = sand.u32 %s33, 1
          %s336 = scalar_lea.sflag [#allocation3], %s335
          %s337 = sand.u32 %s33, 1
          %s338 = smul.addr %s337, 16
          %s339 = scalar_lea.vmem [#allocation2], %s338
          %341 = vsyncadd %s336, 0
          %s342 = smul.addr %s23, 2
          %s343 = smul.addr %s342, 8
          %s344 = scalar_lea.hbm %s0, %s343
          %s346 = sshll.u32 %s344, 4
          %s347 = int_to_ptr.hbm [resolvable:$true] %s346
          %s348 = sshll.u32 %s339, 4
          %s349 = int_to_ptr.vmem [resolvable:$true] %s348
          %351 = dma.hbm_to_vmem [thread:$0]  %s347, 256, %s349, %s336
        $region48: #{tpu_custom_call.1} parent=43 // pred_fallthru
          _
        // Predicated region
        $region49: #{tpu_custom_call.1} parent=43 // pred_check
          %p352 = pneg %p69
        $region50: #{tpu_custom_call.1} parent=43 // pred_check_branch
          %354 = sbr.rel (%p352) target = $region52
        $region51: #{tpu_custom_call.1} parent=43 // pred_region
          %p355 = scmp.lt.s32.totalorder %s23, 1
          %s356 = scalar_select %p355, %s23, 1
          %s357 = smul.addr %s356, 8
          %s358 = scalar_lea.vmem %s1, %s357
        $region52: #{tpu_custom_call.1} parent=43 // pred_fallthru
          _
      $region44: #{tpu_custom_call.1} parent=5 // pred_fallthru
        _
      %p359 = scmp.le.s32.totalorder 1, %s23
      %p360 = scmp.lt.s32.totalorder %s23, 3
      %p361 = pnand %p359, %p360
      %p362 = pneg %p361
      // Predicated region
      $region53: #{tpu_custom_call.1} parent=5 // pred_check
        _
      $region54: #{tpu_custom_call.1} parent=5 // pred_check_branch
        %364 = sbr.rel (%p361) target = $region56
      $region55: #{tpu_custom_call.1} parent=5 // pred_region
        %s365 = ssub.s32 %s23, 1
        %s366 = sand.u32 %s36, 1
        %s367 = scalar_lea.sflag [#allocation3], %s366
        %s368 = sand.u32 %s36, 1
        %s369 = smul.addr %s368, 16
        %s370 = scalar_lea.vmem [#allocation2], %s369
        // Predicated region
        $region57: #{tpu_custom_call.1} parent=55 // pred_check
          %p371 = pneg %p49
        $region58: #{tpu_custom_call.1} parent=55 // pred_check_branch
          %373 = sbr.rel (%p371) target = $region60
        $region59: #{tpu_custom_call.1} parent=55 // pred_region
          %375 = dma.done %s367, 256
        $region60: #{tpu_custom_call.1} parent=55 // pred_fallthru
          _
        // Predicated region
        $region61: #{tpu_custom_call.1} parent=55 // pred_check
          %p376 = pneg %p96
        $region62: #{tpu_custom_call.1} parent=55 // pred_check_branch
          %378 = sbr.rel (%p376) target = $region64
        $region63: #{tpu_custom_call.1} parent=55 // pred_region
          %380 = dma.done [#allocation6], 7680
        $region64: #{tpu_custom_call.1} parent=55 // pred_fallthru
          _
        // Predicated region
        $region65: #{tpu_custom_call.1} parent=55 // pred_check
          %p381 = pneg %p138
        $region66: #{tpu_custom_call.1} parent=55 // pred_check_branch
          %383 = sbr.rel (%p381) target = $region68
        $region67: #{tpu_custom_call.1} parent=55 // pred_region
          %385 = dma.done [#allocation6], 2048
        $region68: #{tpu_custom_call.1} parent=55 // pred_fallthru
          _
        // Predicated region
        $region69: #{tpu_custom_call.1} parent=55 // pred_check
          %p386 = pneg %p180
        $region70: #{tpu_custom_call.1} parent=55 // pred_check_branch
          %388 = sbr.rel (%p386) target = $region72
        $region71: #{tpu_custom_call.1} parent=55 // pred_region
          %390 = dma.done [#allocation9], 4096
        $region72: #{tpu_custom_call.1} parent=55 // pred_fallthru
          _
        // Predicated region
        $region73: #{tpu_custom_call.1} parent=55 // pred_check
          %p391 = pneg %p222
        $region74: #{tpu_custom_call.1} parent=55 // pred_check_branch
          %393 = sbr.rel (%p391) target = $region76
        $region75: #{tpu_custom_call.1} parent=55 // pred_region
          %395 = dma.done [#allocation9], 4096
        $region76: #{tpu_custom_call.1} parent=55 // pred_fallthru
          _
        %s396 = sand.u32 %s36, 1
        %s397 = scalar_lea.sflag [#allocation3], %s396
        %s398 = sand.u32 %s36, 1
        %s399 = smul.addr %s398, 16
        %s400 = scalar_lea.vmem [#allocation2], %s399
        %p401 = pneg %p49
        %p402 = pneg %p46
        %p403 = scmp.lt.s32.totalorder %s28, 1
        %s404 = scalar_select %p403, %s28, 1
        %s405 = smul.addr %s404, 8
        %s406 = scalar_lea.vmem %s1, %s405
        %p407 = pneg %p75
        %p408 = pneg %p72
        %p409 = pneg %p96
        %p410 = pneg %p93
        %p411 = pneg %p117
        %p412 = pneg %p114
        %p413 = pneg %p138
        %p414 = pneg %p135
        %p415 = pneg %p159
        %p416 = pneg %p156
        %p417 = pneg %p180
        %p418 = pneg %p177
        %p419 = pneg %p201
        %p420 = pneg %p198
        %p421 = pneg %p222
        %p422 = pneg %p219
        %p423 = pneg %p248
        %p424 = pneg %p245
        %s425 = sand.u32 %s235, 1
        %s426 = scalar_lea.sflag [#allocation4], %s425
        %s427 = sand.u32 %s235, 1
        %s428 = smul.addr %s427, 8
        %s429 = scalar_lea.vmem [#allocation11], %s428
        %p430 = scmp.lt.s32.totalorder %s28, 1
        %s431 = scalar_select %p430, %s28, 1
        %s432 = smul.addr %s431, 8
        %s433 = scalar_lea.vmem %s1, %s432
        %v434 = vld [vmem:[%s370] sm:$0xff]
        %v435 = vld [vmem:[%s370 + $0x8] sm:$0xff]
        %v436 = vld [vmem:[#allocation5] sm:$0xff]
        %v437 = vld [vmem:[#allocation5 + $0x8] sm:$0xff]
        %v438 = vld [vmem:[#allocation5 + $0x10] sm:$0xff]
        %v439 = vld [vmem:[#allocation5 + $0x18] sm:$0xff]
        %v440 = vld [vmem:[#allocation5 + $0x20] sm:$0xff]
        %v441 = vld [vmem:[#allocation5 + $0x28] sm:$0xff]
        %v442 = vld [vmem:[#allocation5 + $0x30] sm:$0xff]
        %v443 = vld [vmem:[#allocation5 + $0x38] sm:$0xff]
        %v444 = vld [vmem:[#allocation5 + $0x40] sm:$0xff]
        %v445 = vld [vmem:[#allocation5 + $0x48] sm:$0xff]
        %v446 = vld [vmem:[#allocation5 + $0x50] sm:$0xff]
        %v447 = vld [vmem:[#allocation5 + $0x58] sm:$0xff]
        %v448 = vld [vmem:[#allocation5 + $0x60] sm:$0xff]
        %v449 = vld [vmem:[#allocation5 + $0x68] sm:$0xff]
        %v450 = vld [vmem:[#allocation5 + $0x70] sm:$0xff]
        %v451 = vld [vmem:[#allocation5 + $0x78] sm:$0xff]
        %v452 = vld [vmem:[#allocation5 + $0x80] sm:$0xff]
        %v453 = vld [vmem:[#allocation5 + $0x88] sm:$0xff]
        %v454 = vld [vmem:[#allocation5 + $0x90] sm:$0xff]
        %v455 = vld [vmem:[#allocation5 + $0x98] sm:$0xff]
        %v456 = vld [vmem:[#allocation5 + $0xa0] sm:$0xff]
        %v457 = vld [vmem:[#allocation5 + $0xa8] sm:$0xff]
        %v458 = vld [vmem:[#allocation5 + $0xb0] sm:$0xff]
        %v459 = vld [vmem:[#allocation5 + $0xb8] sm:$0xff]
        %v460 = vld [vmem:[#allocation5 + $0xc0] sm:$0xff]
        %v461 = vld [vmem:[#allocation5 + $0xc8] sm:$0xff]
        %v462 = vld [vmem:[#allocation5 + $0xd0] sm:$0xff]
        %v463 = vld [vmem:[#allocation5 + $0xd8] sm:$0xff]
        %v464 = vld [vmem:[#allocation5 + $0xe0] sm:$0xff]
        %v465 = vld [vmem:[#allocation5 + $0xe8] sm:$0xff]
        %v466 = vld [vmem:[#allocation5 + $0xf0] sm:$0xff]
        %v467 = vld [vmem:[#allocation5 + $0xf8] sm:$0xff]
        %v468 = vld [vmem:[#allocation5 + $0x100] sm:$0xff]
        %v469 = vld [vmem:[#allocation5 + $0x108] sm:$0xff]
        %v470 = vld [vmem:[#allocation5 + $0x110] sm:$0xff]
        %v471 = vld [vmem:[#allocation5 + $0x118] sm:$0xff]
        %v472 = vld [vmem:[#allocation5 + $0x120] sm:$0xff]
        %v473 = vld [vmem:[#allocation5 + $0x128] sm:$0xff]
        %v474 = vld [vmem:[#allocation5 + $0x130] sm:$0xff]
        %v475 = vld [vmem:[#allocation5 + $0x138] sm:$0xff]
        %v476 = vld [vmem:[#allocation5 + $0x140] sm:$0xff]
        %v477 = vld [vmem:[#allocation5 + $0x148] sm:$0xff]
        %v478 = vld [vmem:[#allocation5 + $0x150] sm:$0xff]
        %v479 = vld [vmem:[#allocation5 + $0x158] sm:$0xff]
        %v480 = vld [vmem:[#allocation5 + $0x160] sm:$0xff]
        %v481 = vld [vmem:[#allocation5 + $0x168] sm:$0xff]
        %v482 = vld [vmem:[#allocation5 + $0x170] sm:$0xff]
        %v483 = vld [vmem:[#allocation5 + $0x178] sm:$0xff]
        %v484 = vld [vmem:[#allocation5 + $0x180] sm:$0xff]
        %v485 = vld [vmem:[#allocation5 + $0x188] sm:$0xff]
        %v486 = vld [vmem:[#allocation5 + $0x190] sm:$0xff]
        %v487 = vld [vmem:[#allocation5 + $0x198] sm:$0xff]
        %v488 = vld [vmem:[#allocation5 + $0x1a0] sm:$0xff]
        %v489 = vld [vmem:[#allocation5 + $0x1a8] sm:$0xff]
        %v490 = vld [vmem:[#allocation5 + $0x1b0] sm:$0xff]
        %v491 = vld [vmem:[#allocation5 + $0x1b8] sm:$0xff]
        %v492 = vld [vmem:[#allocation5 + $0x1c0] sm:$0xff]
        %v493 = vld [vmem:[#allocation5 + $0x1c8] sm:$0xff]
        %v494 = vld [vmem:[#allocation5 + $0x1d0] sm:$0xff]
        %v495 = vld [vmem:[#allocation5 + $0x1d8] sm:$0xff]
        %v496 = vld [vmem:[%s3] sm:$0x7]
        %v498 = vperm.slane %v496, 0
        %v499 = vperm.slane %v496, 1
        %v500 = vperm.slane %v496, 2
        %vm504 = vcmask 261120
        %v506 = vsel %vm504, %v435, 0
        %508 = vmatpush.msra.mxu0 %v481
        %509 = vmatpush.msra.mxu0 %v478
        %510 = vmatpush.msra.mxu0 %v475
        %511 = vmatpush.msra.mxu0 %v472
        %512 = vmatpush.msra.mxu0 %v469
        %513 = vmatpush.msra.mxu0 %v466
        %514 = vmatpush.msra.mxu0 %v463
        %515 = vmatpush.msra.mxu0 %v460
        %516 = vmatpush.msra.mxu0 %v457
        %517 = vmatpush.msra.mxu0 %v454
        %518 = vmatpush.msra.mxu0 %v451
        %519 = vmatpush.msra.mxu0 %v448
        %520 = vmatpush.msra.mxu0 %v445
        %521 = vmatpush.msra.mxu0 %v442
        %522 = vmatpush.msra.mxu0 %v439
        %523 = vmatpush.msra.mxu0 %v436
        %524 = vmatmul.f32.gmra.mxu0 %v434
        %v525 = vpop.f32.mrf.mxu0
        %v526 = vadd.f32 %v498, %v525
        %527 = vdwg.mxu0
        %528 = vmatpush.msra.mxu0 0.0
        %529 = vmatpush.msra.mxu0 0.0
        %530 = vmatpush.msra.mxu0 0.0
        %531 = vmatpush.msra.mxu0 0.0
        %532 = vmatpush.msra.mxu0 0.0
        %533 = vmatpush.msra.mxu0 0.0
        %534 = vmatpush.msra.mxu0 0.0
        %535 = vmatpush.msra.mxu0 0.0
        %536 = vmatpush.msra.mxu0 0.0
        %537 = vmatpush.msra.mxu0 0.0
        %538 = vmatpush.msra.mxu0 0.0
        %539 = vmatpush.msra.mxu0 0.0
        %540 = vmatpush.msra.mxu0 %v493
        %541 = vmatpush.msra.mxu0 %v490
        %542 = vmatpush.msra.mxu0 %v487
        %543 = vmatpush.msra.mxu0 %v484
        %544 = vmatmul.f32.gmra.mxu0 %v506
        %v545 = vpop.f32.mrf.mxu0
        %v546 = vadd.f32 %v526, %v545
        %547 = vdwg.mxu0
        %548 = vmatpush.msra.mxu0 %v482
        %549 = vmatpush.msra.mxu0 %v479
        %550 = vmatpush.msra.mxu0 %v476
        %551 = vmatpush.msra.mxu0 %v473
        %552 = vmatpush.msra.mxu0 %v470
        %553 = vmatpush.msra.mxu0 %v467
        %554 = vmatpush.msra.mxu0 %v464
        %555 = vmatpush.msra.mxu0 %v461
        %556 = vmatpush.msra.mxu0 %v458
        %557 = vmatpush.msra.mxu0 %v455
        %558 = vmatpush.msra.mxu0 %v452
        %559 = vmatpush.msra.mxu0 %v449
        %560 = vmatpush.msra.mxu0 %v446
        %561 = vmatpush.msra.mxu0 %v443
        %562 = vmatpush.msra.mxu0 %v440
        %563 = vmatpush.msra.mxu0 %v437
        %564 = vmatmul.f32.gmra.mxu0 %v434
        %v565 = vpop.f32.mrf.mxu0
        %v566 = vadd.f32 %v499, %v565
        %567 = vdwg.mxu0
        %568 = vmatpush.msra.mxu0 0.0
        %569 = vmatpush.msra.mxu0 0.0
        %570 = vmatpush.msra.mxu0 0.0
        %571 = vmatpush.msra.mxu0 0.0
        %572 = vmatpush.msra.mxu0 0.0
        %573 = vmatpush.msra.mxu0 0.0
        %574 = vmatpush.msra.mxu0 0.0
        %575 = vmatpush.msra.mxu0 0.0
        %576 = vmatpush.msra.mxu0 0.0
        %577 = vmatpush.msra.mxu0 0.0
        %578 = vmatpush.msra.mxu0 0.0
        %579 = vmatpush.msra.mxu0 0.0
        %580 = vmatpush.msra.mxu0 %v494
        %581 = vmatpush.msra.mxu0 %v491
        %582 = vmatpush.msra.mxu0 %v488
        %583 = vmatpush.msra.mxu0 %v485
        %584 = vmatmul.f32.gmra.mxu0 %v506
        %v585 = vpop.f32.mrf.mxu0
        %v586 = vadd.f32 %v566, %v585
        %587 = vdwg.mxu0
        %588 = vmatpush.msra.mxu0 %v483
        %589 = vmatpush.msra.mxu0 %v480
        %590 = vmatpush.msra.mxu0 %v477
        %591 = vmatpush.msra.mxu0 %v474
        %592 = vmatpush.msra.mxu0 %v471
        %593 = vmatpush.msra.mxu0 %v468
        %594 = vmatpush.msra.mxu0 %v465
        %595 = vmatpush.msra.mxu0 %v462
        %596 = vmatpush.msra.mxu0 %v459
        %597 = vmatpush.msra.mxu0 %v456
        %598 = vmatpush.msra.mxu0 %v453
        %599 = vmatpush.msra.mxu0 %v450
        %600 = vmatpush.msra.mxu0 %v447
        %601 = vmatpush.msra.mxu0 %v444
        %602 = vmatpush.msra.mxu0 %v441
        %603 = vmatpush.msra.mxu0 %v438
        %604 = vmatmul.f32.gmra.mxu0 %v434
        %v605 = vpop.f32.mrf.mxu0
        %v606 = vadd.f32 %v500, %v605
        %607 = vdwg.mxu0
        %608 = vmatpush.msra.mxu0 0.0
        %609 = vmatpush.msra.mxu0 0.0
        %610 = vmatpush.msra.mxu0 0.0
        %611 = vmatpush.msra.mxu0 0.0
        %612 = vmatpush.msra.mxu0 0.0
        %613 = vmatpush.msra.mxu0 0.0
        %614 = vmatpush.msra.mxu0 0.0
        %615 = vmatpush.msra.mxu0 0.0
        %616 = vmatpush.msra.mxu0 0.0
        %617 = vmatpush.msra.mxu0 0.0
        %618 = vmatpush.msra.mxu0 0.0
        %619 = vmatpush.msra.mxu0 0.0
        %620 = vmatpush.msra.mxu0 %v495
        %621 = vmatpush.msra.mxu0 %v492
        %622 = vmatpush.msra.mxu0 %v489
        %623 = vmatpush.msra.mxu0 %v486
        %624 = vmatmul.f32.gmra.mxu0 %v506
        %v625 = vpop.f32.mrf.mxu0
        %v626 = vadd.f32 %v606, %v625
        %627 = vdwg.mxu0
        %v628 = vmax.f32 %v546, 0.0
        %v629 = vmax.f32 %v586, 0.0
        %v630 = vld [vmem:[#allocation7] sm:$0xff]
        %v631 = vld [vmem:[#allocation7 + $0x8] sm:$0xff]
        %v632 = vld [vmem:[#allocation7 + $0x10] sm:$0xff]
        %v633 = vld [vmem:[#allocation7 + $0x18] sm:$0xff]
        %v634 = vld [vmem:[#allocation7 + $0x20] sm:$0xff]
        %v635 = vld [vmem:[#allocation7 + $0x28] sm:$0xff]
        %v636 = vld [vmem:[#allocation7 + $0x30] sm:$0xff]
        %v637 = vld [vmem:[#allocation7 + $0x38] sm:$0xff]
        %v638 = vld [vmem:[#allocation7 + $0x40] sm:$0xff]
        %v639 = vld [vmem:[#allocation7 + $0x48] sm:$0xff]
        %v640 = vld [vmem:[#allocation7 + $0x50] sm:$0xff]
        %v641 = vld [vmem:[#allocation7 + $0x58] sm:$0xff]
        %v642 = vld [vmem:[#allocation7 + $0x60] sm:$0xff]
        %v643 = vld [vmem:[#allocation7 + $0x68] sm:$0xff]
        %v644 = vld [vmem:[#allocation7 + $0x70] sm:$0xff]
        %v645 = vld [vmem:[#allocation7 + $0x78] sm:$0xff]
        %v646 = vld [vmem:[%s5] sm:$0x1]
        %v648 = vperm.slane %v646, 0
        %650 = vmatpush.msra.mxu0 %v645
        %651 = vmatpush.msra.mxu0 %v644
        %652 = vmatpush.msra.mxu0 %v643
        %653 = vmatpush.msra.mxu0 %v642
        %654 = vmatpush.msra.mxu0 %v641
        %655 = vmatpush.msra.mxu0 %v640
        %656 = vmatpush.msra.mxu0 %v639
        %657 = vmatpush.msra.mxu0 %v638
        %658 = vmatpush.msra.mxu0 %v637
        %659 = vmatpush.msra.mxu0 %v636
        %660 = vmatpush.msra.mxu0 %v635
        %661 = vmatpush.msra.mxu0 %v634
        %662 = vmatpush.msra.mxu0 %v633
        %663 = vmatpush.msra.mxu0 %v632
        %664 = vmatpush.msra.mxu0 %v631
        %665 = vmatpush.msra.mxu0 %v630
        %666 = vmatmul.f32.gmra.mxu0 %v629
        %v667 = vpop.f32.mrf.mxu0
        %v668 = vadd.f32 %v648, %v667
        %669 = vdwg.mxu0
        %v670 = vmax.f32 %v668, 0.0
        %v671 = vmul.f32 %v628, %v670
        %v672 = vld [vmem:[#allocation8] sm:$0xff]
        %v673 = vld [vmem:[#allocation8 + $0x8] sm:$0xff]
        %v674 = vld [vmem:[#allocation8 + $0x10] sm:$0xff]
        %v675 = vld [vmem:[#allocation8 + $0x18] sm:$0xff]
        %v676 = vld [vmem:[#allocation8 + $0x20] sm:$0xff]
        %v677 = vld [vmem:[#allocation8 + $0x28] sm:$0xff]
        %v678 = vld [vmem:[#allocation8 + $0x30] sm:$0xff]
        %v679 = vld [vmem:[#allocation8 + $0x38] sm:$0xff]
        %v680 = vld [vmem:[#allocation8 + $0x40] sm:$0xff]
        %v681 = vld [vmem:[#allocation8 + $0x48] sm:$0xff]
        %v682 = vld [vmem:[#allocation8 + $0x50] sm:$0xff]
        %v683 = vld [vmem:[#allocation8 + $0x58] sm:$0xff]
        %v684 = vld [vmem:[#allocation8 + $0x60] sm:$0xff]
        %v685 = vld [vmem:[#allocation8 + $0x68] sm:$0xff]
        %v686 = vld [vmem:[#allocation8 + $0x70] sm:$0xff]
        %v687 = vld [vmem:[#allocation8 + $0x78] sm:$0xff]
        %v688 = vld [vmem:[#allocation8 + $0x80] sm:$0xff]
        %v689 = vld [vmem:[#allocation8 + $0x88] sm:$0xff]
        %v690 = vld [vmem:[#allocation8 + $0x90] sm:$0xff]
        %v691 = vld [vmem:[#allocation8 + $0x98] sm:$0xff]
        %v692 = vld [vmem:[#allocation8 + $0xa0] sm:$0xff]
        %v693 = vld [vmem:[#allocation8 + $0xa8] sm:$0xff]
        %v694 = vld [vmem:[#allocation8 + $0xb0] sm:$0xff]
        %v695 = vld [vmem:[#allocation8 + $0xb8] sm:$0xff]
        %v696 = vld [vmem:[#allocation8 + $0xc0] sm:$0xff]
        %v697 = vld [vmem:[#allocation8 + $0xc8] sm:$0xff]
        %v698 = vld [vmem:[#allocation8 + $0xd0] sm:$0xff]
        %v699 = vld [vmem:[#allocation8 + $0xd8] sm:$0xff]
        %v700 = vld [vmem:[#allocation8 + $0xe0] sm:$0xff]
        %v701 = vld [vmem:[#allocation8 + $0xe8] sm:$0xff]
        %v702 = vld [vmem:[#allocation8 + $0xf0] sm:$0xff]
        %v703 = vld [vmem:[#allocation8 + $0xf8] sm:$0xff]
        %v704 = vld [vmem:[%s7] sm:$0x3]
        %v706 = vperm.slane %v704, 0
        %v707 = vperm.slane %v704, 1
        %710 = vmatpush.msra.mxu0 %v702
        %711 = vmatpush.msra.mxu0 %v700
        %712 = vmatpush.msra.mxu0 %v698
        %713 = vmatpush.msra.mxu0 %v696
        %714 = vmatpush.msra.mxu0 %v694
        %715 = vmatpush.msra.mxu0 %v692
        %716 = vmatpush.msra.mxu0 %v690
        %717 = vmatpush.msra.mxu0 %v688
        %718 = vmatpush.msra.mxu0 %v686
        %719 = vmatpush.msra.mxu0 %v684
        %720 = vmatpush.msra.mxu0 %v682
        %721 = vmatpush.msra.mxu0 %v680
        %722 = vmatpush.msra.mxu0 %v678
        %723 = vmatpush.msra.mxu0 %v676
        %724 = vmatpush.msra.mxu0 %v674
        %725 = vmatpush.msra.mxu0 %v672
        %726 = vmatmul.f32.gmra.mxu0 %v671
        %v727 = vpop.f32.mrf.mxu0
        %v728 = vadd.f32 %v706, %v727
        %729 = vdwg.mxu0
        %730 = vmatpush.msra.mxu0 %v703
        %731 = vmatpush.msra.mxu0 %v701
        %732 = vmatpush.msra.mxu0 %v699
        %733 = vmatpush.msra.mxu0 %v697
        %734 = vmatpush.msra.mxu0 %v695
        %735 = vmatpush.msra.mxu0 %v693
        %736 = vmatpush.msra.mxu0 %v691
        %737 = vmatpush.msra.mxu0 %v689
        %738 = vmatpush.msra.mxu0 %v687
        %739 = vmatpush.msra.mxu0 %v685
        %740 = vmatpush.msra.mxu0 %v683
        %741 = vmatpush.msra.mxu0 %v681
        %742 = vmatpush.msra.mxu0 %v679
        %743 = vmatpush.msra.mxu0 %v677
        %744 = vmatpush.msra.mxu0 %v675
        %745 = vmatpush.msra.mxu0 %v673
        %746 = vmatmul.f32.gmra.mxu0 %v671
        %v747 = vpop.f32.mrf.mxu0
        %v748 = vadd.f32 %v707, %v747
        %749 = vdwg.mxu0
        %v750 = vlaneseq
        %v751 = vand.u32 %v750, 127
        %v752 = vadd.s32 %v751, 128
        %v753 = vld [vmem:[%s433] sm:$0xff]
        %754 = vset.pattern.permute.xlu0 0
        %755 = vperm.xlu0 %754, %v753
        %v756 = vpop.permute.xlu0 %755
        %vm757 = vcmp.eq.s32.totalorder %v751, %v756
        %vm758 = vcmp.eq.s32.totalorder %v752, %v756
        %v759 = vsel %vm757, 1, 0
        %v760 = vsel %vm758, 1, 0
        %v761 = vcvt.s32.f32 %v759
        %v762 = vcvt.s32.f32 %v760
        %v763 = vld [vmem:[#allocation10] sm:$0xff]
        %v764 = vld [vmem:[#allocation10 + $0x8] sm:$0xff]
        %v765 = vld [vmem:[#allocation10 + $0x10] sm:$0xff]
        %v766 = vld [vmem:[#allocation10 + $0x18] sm:$0xff]
        %v767 = vld [vmem:[#allocation10 + $0x20] sm:$0xff]
        %v768 = vld [vmem:[#allocation10 + $0x28] sm:$0xff]
        %v769 = vld [vmem:[#allocation10 + $0x30] sm:$0xff]
        %v770 = vld [vmem:[#allocation10 + $0x38] sm:$0xff]
        %v771 = vld [vmem:[#allocation10 + $0x40] sm:$0xff]
        %v772 = vld [vmem:[#allocation10 + $0x48] sm:$0xff]
        %v773 = vld [vmem:[#allocation10 + $0x50] sm:$0xff]
        %v774 = vld [vmem:[#allocation10 + $0x58] sm:$0xff]
        %v775 = vld [vmem:[#allocation10 + $0x60] sm:$0xff]
        %v776 = vld [vmem:[#allocation10 + $0x68] sm:$0xff]
        %v777 = vld [vmem:[#allocation10 + $0x70] sm:$0xff]
        %v778 = vld [vmem:[#allocation10 + $0x78] sm:$0xff]
        %v779 = vld [vmem:[#allocation10 + $0x80] sm:$0xff]
        %v780 = vld [vmem:[#allocation10 + $0x88] sm:$0xff]
        %v781 = vld [vmem:[#allocation10 + $0x90] sm:$0xff]
        %v782 = vld [vmem:[#allocation10 + $0x98] sm:$0xff]
        %v783 = vld [vmem:[#allocation10 + $0xa0] sm:$0xff]
        %v784 = vld [vmem:[#allocation10 + $0xa8] sm:$0xff]
        %v785 = vld [vmem:[#allocation10 + $0xb0] sm:$0xff]
        %v786 = vld [vmem:[#allocation10 + $0xb8] sm:$0xff]
        %v787 = vld [vmem:[#allocation10 + $0xc0] sm:$0xff]
        %v788 = vld [vmem:[#allocation10 + $0xc8] sm:$0xff]
        %v789 = vld [vmem:[#allocation10 + $0xd0] sm:$0xff]
        %v790 = vld [vmem:[#allocation10 + $0xd8] sm:$0xff]
        %v791 = vld [vmem:[#allocation10 + $0xe0] sm:$0xff]
        %v792 = vld [vmem:[#allocation10 + $0xe8] sm:$0xff]
        %v793 = vld [vmem:[#allocation10 + $0xf0] sm:$0xff]
        %v794 = vld [vmem:[#allocation10 + $0xf8] sm:$0xff]
        %795 = vmatpush.msra.mxu0 %v778
        %796 = vmatpush.msra.mxu0 %v777
        %797 = vmatpush.msra.mxu0 %v776
        %798 = vmatpush.msra.mxu0 %v775
        %799 = vmatpush.msra.mxu0 %v774
        %800 = vmatpush.msra.mxu0 %v773
        %801 = vmatpush.msra.mxu0 %v772
        %802 = vmatpush.msra.mxu0 %v771
        %803 = vmatpush.msra.mxu0 %v770
        %804 = vmatpush.msra.mxu0 %v769
        %805 = vmatpush.msra.mxu0 %v768
        %806 = vmatpush.msra.mxu0 %v767
        %807 = vmatpush.msra.mxu0 %v766
        %808 = vmatpush.msra.mxu0 %v765
        %809 = vmatpush.msra.mxu0 %v764
        %810 = vmatpush.msra.mxu0 %v763
        %811 = vmatmul.f32.gmra.mxu0 %v761
        %v812 = vpop.f32.mrf.mxu0
        %v813 = vadd.f32 0.0, %v812
        %814 = vdwg.mxu0
        %815 = vmatpush.msra.mxu0 %v794
        %816 = vmatpush.msra.mxu0 %v793
        %817 = vmatpush.msra.mxu0 %v792
        %818 = vmatpush.msra.mxu0 %v791
        %819 = vmatpush.msra.mxu0 %v790
        %820 = vmatpush.msra.mxu0 %v789
        %821 = vmatpush.msra.mxu0 %v788
        %822 = vmatpush.msra.mxu0 %v787
        %823 = vmatpush.msra.mxu0 %v786
        %824 = vmatpush.msra.mxu0 %v785
        %825 = vmatpush.msra.mxu0 %v784
        %826 = vmatpush.msra.mxu0 %v783
        %827 = vmatpush.msra.mxu0 %v782
        %828 = vmatpush.msra.mxu0 %v781
        %829 = vmatpush.msra.mxu0 %v780
        %830 = vmatpush.msra.mxu0 %v779
        %831 = vmatmul.f32.gmra.mxu0 %v762
        %v832 = vpop.f32.mrf.mxu0
        %v833 = vadd.f32 %v813, %v832
        %834 = vdwg.mxu0
        %v835 = vadd.f32 %v626, %v833
        %v836 = vadd.f32 %v835, %v748
        %v837 = vxor.u32 %v836, 2147483648
        %v838 = vmul.f32 %v837, 1.442695
        %v839 = vpow.pop %v838
        %v840 = vadd.f32 %v839, 1.0
        %v841 = vrcp.pop %v840
        %v842 = vmul.f32 %v840, %v841
        %v843 = vsub.f32 1.0, %v842
        %v844 = vmul.f32 %v841, %v843
        %v845 = vadd.f32 %v841, %v844
        %vm846 = vweird.f32 %v840
        %vm847 = vweird.f32 %v841
        %vm848 = vmor %vm846, %vm847
        %v849 = vsel %vm848, %v841, %v845
        %v850 = vand.u32 2147483647, %v840
        %vm851 = vcmp.eq.f32.partialorder %v850, 8.507059e+37
        %v852 = vand.u32 %v840, 2147483648
        %v853 = vor.u32 1.1754944e-38, %v852
        %v854 = vsel %vm851, %v853, %v849
        %v855 = vmul.f32 1.0, %v854
        %v856 = vmul.f32 %v728, %v855
        %857 = vst [vmem:[%s429] sm:$0xff] %v856
        %s858 = sand.u32 %s235, 1
        %s859 = scalar_lea.sflag [#allocation4], %s858
        %s860 = sand.u32 %s235, 1
        %s861 = smul.addr %s860, 8
        %s862 = scalar_lea.vmem [#allocation11], %s861
        // Predicated region
        $region77: #{tpu_custom_call.1} parent=55 // pred_check
          %p863 = pneg %p245
        $region78: #{tpu_custom_call.1} parent=55 // pred_check_branch
          %865 = sbr.rel (%p863) target = $region80
        $region79: #{tpu_custom_call.1} parent=55 // pred_region
          %867 = vsyncadd %s859, 0
          %s868 = smul.addr %s28, 8
          %s869 = scalar_lea.hbm %s9, %s868
          %s871 = sshll.u32 %s862, 4
          %s872 = int_to_ptr.vmem [resolvable:$true] %s871
          %s873 = sshll.u32 %s869, 4
          %s874 = int_to_ptr.hbm [resolvable:$true] %s873
          %876 = dma.vmem_to_hbm [thread:$0]  %s872, 128, %s874, %s859
        $region80: #{tpu_custom_call.1} parent=55 // pred_fallthru
          _
      $region56: #{tpu_custom_call.1} parent=5 // pred_fallthru
        _
      %p877 = scmp.le.s32.totalorder 2, %s23
      // Predicated region
      $region81: #{tpu_custom_call.1} parent=5 // pred_check
        %p878 = pneg %p877
      $region82: #{tpu_custom_call.1} parent=5 // pred_check_branch
        %880 = sbr.rel (%p878) target = $region84
      $region83: #{tpu_custom_call.1} parent=5 // pred_region
        %s881 = ssub.s32 %s23, 2
        // Predicated region
        $region85: #{tpu_custom_call.1} parent=83 // pred_check
          %p882 = pneg %p251
        $region86: #{tpu_custom_call.1} parent=83 // pred_check_branch
          %884 = sbr.rel (%p882) target = $region88
        $region87: #{tpu_custom_call.1} parent=83 // pred_region
          %s885 = sand.u32 %s236, 1
          %s886 = scalar_lea.sflag [#allocation4], %s885
          %s887 = sand.u32 %s236, 1
          %s888 = smul.addr %s887, 8
          %s889 = scalar_lea.vmem [#allocation11], %s888
          %891 = dma.done %s886, 128
        $region88: #{tpu_custom_call.1} parent=83 // pred_fallthru
          _
      $region84: #{tpu_custom_call.1} parent=5 // pred_fallthru
        _
    $region6: #{tpu_custom_call.1} parent=1 // loop_footer
      %s27 = sadd.s32 1, %s23
    $region7: #{tpu_custom_call.1} parent=1 // loop_footer_branch
      %22 = sbr.rel target = $region3
    $region8: #{tpu_custom_call.1} parent=1 // loop_exit
      _
    %892 = vsyncpa [#allocation3], 1
    %s893 = scalar_lea.sflag [#allocation3], 1
    %894 = vsyncpa %s893, 1
    %895 = vsyncpa [#allocation6], 1
    %896 = vsyncpa [#allocation9], 1
    %897 = vsyncpa [#allocation4], 1
    %s898 = scalar_lea.sflag [#allocation4], 1
    %899 = vsyncpa %s898, 1

</llo_original>
